<compile_context>
chip_gen: v7x
topology: tpu7x:2x2x1
jax: 0.10.0
libtpu: 0.0.40
codegen_flags: <defaults>
</compile_context>

<pallas_src>
import jax
import jax.numpy as jnp
from jax.experimental import pallas as pl
from jax.experimental.pallas import tpu as pltpu


def make_contrast_kernel(n: int, temperature: float, lambda_1: float):
    inv_temp = 1.0 / float(temperature)
    lam = float(lambda_1)

    def kernel(x_ref, w1t_ref, b1_ref, w2t_ref, b2_ref, pos_ref, pos_t_ref, out_ref):
        # ---- shared projection for the stacked (meta; sim) rows : (2N, H) ----
        x = x_ref[...]
        h = jnp.dot(x, w1t_ref[...], preferred_element_type=jnp.float32) + b1_ref[...]
        # ELU (alpha = 1.0)
        h = jnp.where(h > 0, h, jnp.exp(h) - 1.0)
        p = jnp.dot(h, w2t_ref[...], preferred_element_type=jnp.float32) + b2_ref[...]

        # ---- cosine similarity / temperature (pre-normalize rows, EUP rsqrt) ----
        # Matches reference fenzi / fenmu / temperature (reference has no eps on fenmu).
        inv_norm = jax.lax.rsqrt(jnp.sum(p * p, axis=-1, keepdims=True))  # (2N, 1)
        p_hat = p * inv_norm

        meta_hat = p_hat[:n, :] * inv_temp  # fold 1/temperature into meta side
        sim_hat = p_hat[n:, :]

        # scores[i, j] = <meta_hat_i, sim_hat_j>   (A @ B.T as an NT dot_general)
        scores = jax.lax.dot_general(
            meta_hat, sim_hat,
            dimension_numbers=(((1,), (1,)), ((), ())),
            preferred_element_type=jnp.float32,
        )
        view_sim = jnp.exp(scores)  # (N, N)

        pos = pos_ref[...]
        pos_t = pos_t_ref[...]

        # ---- loss_meta: row-normalized view_sim, in log space (no (N,N) divide) ----
        row_sum = jnp.sum(view_sim, axis=1, keepdims=True)                 # (N, 1)
        meta_num = jnp.sum(view_sim * pos, axis=1, keepdims=True)          # (N, 1)
        loss_meta = -jnp.mean(jnp.log(meta_num) - jnp.log(row_sum + 1e-8))

        # ---- loss_sim: row-normalized view_sim.T == column-normalized view_sim ----
        col_sum = jnp.sum(view_sim, axis=0, keepdims=True)                 # (1, N)
        sim_num = jnp.sum(view_sim * pos_t, axis=0, keepdims=True)         # (1, N)
        loss_sim = -jnp.mean(jnp.log(sim_num) - jnp.log(col_sum + 1e-8))

        out_ref[0, 0] = lam * loss_meta + (1.0 - lam) * loss_sim

    return kernel


def contrast_learning_forward(meta_, sim_, pos, params, *, temperature, lambda_1):
    w1, b1, w2, b2 = params
    n = meta_.shape[0]
    # Wrapper-side layout work (free at trace time):
    #   stack inputs, pre-transpose weights to [in, out], pass pos and pos.T.
    x = jnp.concatenate([meta_, sim_], axis=0)  # (2N, H)
    kernel = make_contrast_kernel(n, float(temperature), float(lambda_1))
    out = pl.pallas_call(
        kernel,
        out_shape=jax.ShapeDtypeStruct((1, 1), jnp.float32),
        in_specs=[pl.BlockSpec(memory_space=pltpu.MemorySpace.VMEM)] * 7,
        out_specs=pl.BlockSpec(memory_space=pltpu.MemorySpace.SMEM),
    )(
        x,
        w1.T,                 # [in, out]
        b1.reshape(1, -1),
        w2.T,                 # [in, out]
        b2.reshape(1, -1),
        pos,
        pos.T,
    )
    return out[0, 0]


def init_params(key, hidden):
    # xavier_normal_ with gain=1.414: std = gain * sqrt(2 / (fan_in + fan_out))
    k1, k2 = jax.random.split(key)
    std = 1.414 * (2.0 / (hidden + hidden)) ** 0.5
    w1 = std * jax.random.normal(k1, (hidden, hidden), jnp.float32)
    w2 = std * jax.random.normal(k2, (hidden, hidden), jnp.float32)
    # nn.Linear bias init is not touched by the module's explicit init; use zeros deterministically.
    b1 = jnp.zeros((hidden,), jnp.float32)
    b2 = jnp.zeros((hidden,), jnp.float32)
    return w1, b1, w2, b2


if __name__ == "__main__":
    N, hidden = 8, 32
    temperature, lambda_1 = 0.5, 0.6

    key = jax.random.PRNGKey(0)
    k_meta, k_sim, k_params = jax.random.split(key, 3)

    meta_ = jax.random.normal(k_meta, (N, hidden), jnp.float32)
    sim_ = jax.random.normal(k_sim, (N, hidden), jnp.float32)
    # positive-sample-pair indicator: identity guarantees each row has a positive
    pos = jnp.eye(N, dtype=jnp.float32)

    params = init_params(k_params, hidden)

    loss = contrast_learning_forward(
        meta_, sim_, pos, params, temperature=temperature, lambda_1=lambda_1
    )
    jax.block_until_ready(loss)
    print("KERNEL_OK")
</pallas_src>

<mosaic_0001>
module attributes {stable_mosaic.version = 11 : i64} {
  func.func @kernel(%arg0: memref<16x32xf32, #tpu.memory_space<vmem>>, %arg1: memref<32x32xf32, #tpu.memory_space<vmem>>, %arg2: memref<1x32xf32, #tpu.memory_space<vmem>>, %arg3: memref<32x32xf32, #tpu.memory_space<vmem>>, %arg4: memref<1x32xf32, #tpu.memory_space<vmem>>, %arg5: memref<8x8xf32, #tpu.memory_space<vmem>>, %arg6: memref<8x8xf32, #tpu.memory_space<vmem>>, %arg7: memref<1x1xf32, #tpu.memory_space<smem>>) attributes {dimension_semantics = [], scalar_prefetch = 0 : i64, scratch_operands = 0 : i64, tpu.core_type = #tpu.core_type<tc>} {
    %c0 = arith.constant 0 : index
    %c0_0 = arith.constant 0 : index
    %0 = vector.load %arg0[%c0, %c0_0] : memref<16x32xf32, #tpu.memory_space<vmem>>, vector<16x32xf32>
    %c0_1 = arith.constant 0 : index
    %c0_2 = arith.constant 0 : index
    %1 = vector.load %arg1[%c0_1, %c0_2] : memref<32x32xf32, #tpu.memory_space<vmem>>, vector<32x32xf32>
    %cst = arith.constant dense<0.000000e+00> : vector<16x32xf32>
    %2 = tpu.matmul %0, %1, %cst {dimension_numbers = #tpu.dot_dimension_numbers<[1], [0], [0], [1], [0, 0, 1, 1], [], []>} : vector<16x32xf32>, vector<32x32xf32>, vector<16x32xf32> -> vector<16x32xf32>
    %c0_3 = arith.constant 0 : index
    %c0_4 = arith.constant 0 : index
    %3 = vector.load %arg2[%c0_3, %c0_4] : memref<1x32xf32, #tpu.memory_space<vmem>>, vector<1x32xf32>
    %4 = vector.broadcast %3 : vector<1x32xf32> to vector<16x32xf32>
    %5 = arith.addf %2, %4 : vector<16x32xf32>
    %cst_5 = arith.constant 0.000000e+00 : f32
    %6 = vector.broadcast %cst_5 : f32 to vector<16x32xf32>
    %7 = arith.cmpf ogt, %5, %6 : vector<16x32xf32>
    %8 = math.exp %5 : vector<16x32xf32>
    %cst_6 = arith.constant 1.000000e+00 : f32
    %9 = vector.broadcast %cst_6 : f32 to vector<16x32xf32>
    %10 = arith.subf %8, %9 : vector<16x32xf32>
    %11 = arith.select %7, %5, %10 : vector<16x32xi1>, vector<16x32xf32>
    %c0_7 = arith.constant 0 : index
    %c0_8 = arith.constant 0 : index
    %12 = vector.load %arg3[%c0_7, %c0_8] : memref<32x32xf32, #tpu.memory_space<vmem>>, vector<32x32xf32>
    %cst_9 = arith.constant dense<0.000000e+00> : vector<16x32xf32>
    %13 = tpu.matmul %11, %12, %cst_9 {dimension_numbers = #tpu.dot_dimension_numbers<[1], [0], [0], [1], [0, 0, 1, 1], [], []>} : vector<16x32xf32>, vector<32x32xf32>, vector<16x32xf32> -> vector<16x32xf32>
    %c0_10 = arith.constant 0 : index
    %c0_11 = arith.constant 0 : index
    %14 = vector.load %arg4[%c0_10, %c0_11] : memref<1x32xf32, #tpu.memory_space<vmem>>, vector<1x32xf32>
    %15 = vector.broadcast %14 : vector<1x32xf32> to vector<16x32xf32>
    %16 = arith.addf %13, %15 : vector<16x32xf32>
    %17 = arith.mulf %16, %16 : vector<16x32xf32>
    %cst_12 = arith.constant dense<0.000000e+00> : vector<16xf32>
    %18 = vector.multi_reduction <add>, %17, %cst_12 [1] : vector<16x32xf32> to vector<16xf32>
    %19 = vector.shape_cast %18 : vector<16xf32> to vector<16x1xf32>
    %20 = math.rsqrt %19 : vector<16x1xf32>
    %21 = vector.broadcast %20 : vector<16x1xf32> to vector<16x32xf32>
    %22 = arith.mulf %16, %21 : vector<16x32xf32>
    %23 = vector.extract_strided_slice %22 {offsets = [0, 0], sizes = [8, 32], strides = [1, 1]} : vector<16x32xf32> to vector<8x32xf32>
    %cst_13 = arith.constant 2.000000e+00 : f32
    %24 = vector.broadcast %cst_13 : f32 to vector<8x32xf32>
    %25 = arith.mulf %23, %24 : vector<8x32xf32>
    %26 = vector.extract_strided_slice %22 {offsets = [8, 0], sizes = [8, 32], strides = [1, 1]} : vector<16x32xf32> to vector<8x32xf32>
    %cst_14 = arith.constant dense<0.000000e+00> : vector<8x8xf32>
    %27 = tpu.matmul %25, %26, %cst_14 {dimension_numbers = #tpu.dot_dimension_numbers<[1], [1], [0], [0], [0, 0, 1, 0], [], []>} : vector<8x32xf32>, vector<8x32xf32>, vector<8x8xf32> -> vector<8x8xf32>
    %28 = math.exp %27 : vector<8x8xf32>
    %c0_15 = arith.constant 0 : index
    %c0_16 = arith.constant 0 : index
    %29 = vector.load %arg5[%c0_15, %c0_16] : memref<8x8xf32, #tpu.memory_space<vmem>>, vector<8x8xf32>
    %c0_17 = arith.constant 0 : index
    %c0_18 = arith.constant 0 : index
    %30 = vector.load %arg6[%c0_17, %c0_18] : memref<8x8xf32, #tpu.memory_space<vmem>>, vector<8x8xf32>
    %cst_19 = arith.constant dense<0.000000e+00> : vector<8xf32>
    %31 = vector.multi_reduction <add>, %28, %cst_19 [1] : vector<8x8xf32> to vector<8xf32>
    %32 = vector.shape_cast %31 : vector<8xf32> to vector<8x1xf32>
    %33 = arith.mulf %28, %29 : vector<8x8xf32>
    %cst_20 = arith.constant dense<0.000000e+00> : vector<8xf32>
    %34 = vector.multi_reduction <add>, %33, %cst_20 [1] : vector<8x8xf32> to vector<8xf32>
    %35 = vector.shape_cast %34 : vector<8xf32> to vector<8x1xf32>
    %36 = math.log %35 : vector<8x1xf32>
    %cst_21 = arith.constant 9.99999993E-9 : f32
    %37 = vector.broadcast %cst_21 : f32 to vector<8x1xf32>
    %38 = arith.addf %32, %37 : vector<8x1xf32>
    %39 = math.log %38 : vector<8x1xf32>
    %40 = arith.subf %36, %39 : vector<8x1xf32>
    %41 = vector.shape_cast %40 : vector<8x1xf32> to vector<1x8x1xf32>
    %cst_22 = arith.constant dense<0.000000e+00> : vector<1xf32>
    %42 = vector.multi_reduction <add>, %41, %cst_22 [1, 2] : vector<1x8x1xf32> to vector<1xf32>
    %43 = vector.shape_cast %42 : vector<1xf32> to vector<1x1x1xf32>
    %44 = vector.extract %43[0, 0, 0] : f32 from vector<1x1x1xf32>
    %cst_23 = arith.constant 8.000000e+00 : f32
    %45 = arith.divf %44, %cst_23 : f32
    %cst_24 = arith.constant 0.000000e+00 : f32
    %46 = arith.subf %cst_24, %45 : f32
    %cst_25 = arith.constant dense<0.000000e+00> : vector<8xf32>
    %47 = vector.multi_reduction <add>, %28, %cst_25 [0] : vector<8x8xf32> to vector<8xf32>
    %48 = vector.shape_cast %47 : vector<8xf32> to vector<1x8xf32>
    %49 = arith.mulf %28, %30 : vector<8x8xf32>
    %cst_26 = arith.constant dense<0.000000e+00> : vector<8xf32>
    %50 = vector.multi_reduction <add>, %49, %cst_26 [0] : vector<8x8xf32> to vector<8xf32>
    %51 = vector.shape_cast %50 : vector<8xf32> to vector<1x8xf32>
    %52 = math.log %51 : vector<1x8xf32>
    %cst_27 = arith.constant 9.99999993E-9 : f32
    %53 = vector.broadcast %cst_27 : f32 to vector<1x8xf32>
    %54 = arith.addf %48, %53 : vector<1x8xf32>
    %55 = math.log %54 : vector<1x8xf32>
    %56 = arith.subf %52, %55 : vector<1x8xf32>
    %57 = vector.shape_cast %56 : vector<1x8xf32> to vector<1x1x8xf32>
    %cst_28 = arith.constant dense<0.000000e+00> : vector<1xf32>
    %58 = vector.multi_reduction <add>, %57, %cst_28 [1, 2] : vector<1x1x8xf32> to vector<1xf32>
    %59 = vector.shape_cast %58 : vector<1xf32> to vector<1x1x1xf32>
    %60 = vector.extract %59[0, 0, 0] : f32 from vector<1x1x1xf32>
    %cst_29 = arith.constant 8.000000e+00 : f32
    %61 = arith.divf %60, %cst_29 : f32
    %cst_30 = arith.constant 0.000000e+00 : f32
    %62 = arith.subf %cst_30, %61 : f32
    %cst_31 = arith.constant 6.000000e-01 : f32
    %63 = arith.mulf %cst_31, %46 : f32
    %cst_32 = arith.constant 4.000000e-01 : f32
    %64 = arith.mulf %cst_32, %62 : f32
    %65 = arith.addf %63, %64 : f32
    %c0_33 = arith.constant 0 : index
    %c0_34 = arith.constant 0 : index
    %66 = memref.load %arg7[%c0_33, %c0_34] : memref<1x1xf32, #tpu.memory_space<smem>>
    memref.store %65, %arg7[%c0_33, %c0_34] : memref<1x1xf32, #tpu.memory_space<smem>>
    return
  }
}

</mosaic_0001>

<llo_original>
// kernel: tpu_custom_call.1
$region0: #{tpu_custom_call.1}
  #allocation0 [shape = 'u32[]', space=smem, size = 0x4, offset = 0x4, fixed_abs, tag = 'smem constant byte address 0x4 - core index']
  #allocation1 [shape = 'u32[144,128]{1,0:T(1,128)}', space=vmem, size = 0x12000, scoped, tag = 'internal scratch']
  %s0 = inlined_call_operand.hbm [shape: f32[16,32], index: 0, kind: input, shape index: {}]
  %s1 = inlined_call_operand.hbm [shape: f32[32,32], index: 1, kind: input, shape index: {}]
  %s2 = inlined_call_operand.vmem [shape: f32[1,32], index: 2, kind: input, shape index: {}]
  %s3 = inlined_call_operand.hbm [shape: f32[32,32], index: 3, kind: input, shape index: {}]
  %s4 = inlined_call_operand.vmem [shape: f32[1,32], index: 4, kind: input, shape index: {}]
  %s5 = inlined_call_operand.vmem [shape: f32[8,8], index: 5, kind: input, shape index: {}]
  %s6 = inlined_call_operand.vmem [shape: f32[8,8], index: 6, kind: input, shape index: {}]
  %s7 = inlined_call_operand.hbm [shape: f32[1,1], index: 7, kind: output, shape index: {}]
  %s8 = sld [smem:[#allocation0]]
  $region50: #{tpu_custom_call.1} parent=0
    _
  %s10 = ssub.s32 1, %s8
  %s11 = scalar_select 0, %s10, %s8
  $region1: #{tpu_custom_call.1} parent=0
    #allocation2 [shape = 'u8[8192]{0}', space=vmem, size = 0x2000, scoped, tag = 'input window, operand 0, single buffered']
    #allocation3 [shape = 's32[1]{0}', space=sflag, size = 0x4, scoped, tag = 'scoped memory for tpu_custom_call.1']
    #allocation4 [shape = 's32[1]{0}', space=sflag, size = 0x4, scoped, tag = 'scoped memory for tpu_custom_call.1']
    #allocation5 [shape = 'u8[16384]{0}', space=vmem, size = 0x4000, scoped, tag = 'input window, operand 1, single buffered']
    #allocation6 [shape = 's32[1]{0}', space=sflag, size = 0x4, scoped, tag = 'scoped memory for tpu_custom_call.1']
    #allocation7 [shape = 'u8[16384]{0}', space=vmem, size = 0x4000, scoped, tag = 'input window, operand 3, single buffered']
    #allocation8 [shape = 'u8[512]{0}', space=smem, size = 0x200, scoped, tag = 'output window, operand 0, single buffered']
    %12 = vsyncpa [#allocation3], 0
    %13 = vsyncpa [#allocation6], 0
    %14 = vsyncpa [#allocation4], 0
    // Predicated region
    $region2: #{tpu_custom_call.1} parent=1 // pred_check
      _
    $region3: #{tpu_custom_call.1} parent=1 // pred_check_branch
      %16 = sbr.rel (0) target = $region5
    $region4: #{tpu_custom_call.1} parent=1 // pred_region
      %s18 = ssub.s32 256, 256
      %19 = vsyncadd [#allocation3], %s18
      %s20 = sshll.u32 [#allocation2], 4
      %s21 = int_to_ptr.vmem [resolvable:$true] %s20
      %26 = dma.hbm_to_vmem [thread:$0]  %s0, 256, %s21, [#allocation3], 128, 128, 8
    $region5: #{tpu_custom_call.1} parent=1 // pred_fallthru
      _
    // Predicated region
    $region6: #{tpu_custom_call.1} parent=1 // pred_check
      _
    $region7: #{tpu_custom_call.1} parent=1 // pred_check_branch
      %28 = sbr.rel (0) target = $region9
    $region8: #{tpu_custom_call.1} parent=1 // pred_region
      %s30 = ssub.s32 512, 512
      %31 = vsyncadd [#allocation6], %s30
      %s32 = sshll.u32 [#allocation5], 4
      %s33 = int_to_ptr.vmem [resolvable:$true] %s32
      %38 = dma.hbm_to_vmem [thread:$0]  %s1, 512, %s33, [#allocation6], 128, 128, 8
    $region9: #{tpu_custom_call.1} parent=1 // pred_fallthru
      _
    // Predicated region
    $region10: #{tpu_custom_call.1} parent=1 // pred_check
      _
    $region11: #{tpu_custom_call.1} parent=1 // pred_check_branch
      %40 = sbr.rel (0) target = $region13
    $region12: #{tpu_custom_call.1} parent=1 // pred_region
      _
    $region13: #{tpu_custom_call.1} parent=1 // pred_fallthru
      _
    // Predicated region
    $region14: #{tpu_custom_call.1} parent=1 // pred_check
      _
    $region15: #{tpu_custom_call.1} parent=1 // pred_check_branch
      %42 = sbr.rel (0) target = $region17
    $region16: #{tpu_custom_call.1} parent=1 // pred_region
      %s44 = ssub.s32 512, 512
      %45 = vsyncadd [#allocation6], %s44
      %s46 = sshll.u32 [#allocation7], 4
      %s47 = int_to_ptr.vmem [resolvable:$true] %s46
      %52 = dma.hbm_to_vmem [thread:$0]  %s3, 512, %s47, [#allocation6], 128, 128, 8
    $region17: #{tpu_custom_call.1} parent=1 // pred_fallthru
      _
    // Predicated region
    $region18: #{tpu_custom_call.1} parent=1 // pred_check
      _
    $region19: #{tpu_custom_call.1} parent=1 // pred_check_branch
      %54 = sbr.rel (0) target = $region21
    $region20: #{tpu_custom_call.1} parent=1 // pred_region
      _
    $region21: #{tpu_custom_call.1} parent=1 // pred_fallthru
      _
    // Predicated region
    $region22: #{tpu_custom_call.1} parent=1 // pred_check
      _
    $region23: #{tpu_custom_call.1} parent=1 // pred_check_branch
      %56 = sbr.rel (0) target = $region25
    $region24: #{tpu_custom_call.1} parent=1 // pred_region
      _
    $region25: #{tpu_custom_call.1} parent=1 // pred_fallthru
      _
    // Predicated region
    $region26: #{tpu_custom_call.1} parent=1 // pred_check
      _
    $region27: #{tpu_custom_call.1} parent=1 // pred_check_branch
      %58 = sbr.rel (0) target = $region29
    $region28: #{tpu_custom_call.1} parent=1 // pred_region
      _
    $region29: #{tpu_custom_call.1} parent=1 // pred_fallthru
      _
    // Predicated region
    $region30: #{tpu_custom_call.1} parent=1 // pred_check
      _
    $region31: #{tpu_custom_call.1} parent=1 // pred_check_branch
      %60 = sbr.rel (0) target = $region33
    $region32: #{tpu_custom_call.1} parent=1 // pred_region
      %61 = dma.done [#allocation3], 256
    $region33: #{tpu_custom_call.1} parent=1 // pred_fallthru
      _
    // Predicated region
    $region34: #{tpu_custom_call.1} parent=1 // pred_check
      _
    $region35: #{tpu_custom_call.1} parent=1 // pred_check_branch
      %63 = sbr.rel (0) target = $region37
    $region36: #{tpu_custom_call.1} parent=1 // pred_region
      %64 = dma.done [#allocation6], 512
    $region37: #{tpu_custom_call.1} parent=1 // pred_fallthru
      _
    // Predicated region
    $region38: #{tpu_custom_call.1} parent=1 // pred_check
      _
    $region39: #{tpu_custom_call.1} parent=1 // pred_check_branch
      %66 = sbr.rel (0) target = $region41
    $region40: #{tpu_custom_call.1} parent=1 // pred_region
      %67 = dma.done [#allocation6], 512
    $region41: #{tpu_custom_call.1} parent=1 // pred_fallthru
      _
    %v68 = vld [vmem:[#allocation2] sm:$0xff]
    %v69 = vld [vmem:[#allocation2 + $0x8] sm:$0xff]
    %v70 = vld [vmem:[#allocation5] sm:$0xff]
    %v71 = vld [vmem:[#allocation5 + $0x8] sm:$0xff]
    %v72 = vld [vmem:[#allocation5 + $0x10] sm:$0xff]
    %v73 = vld [vmem:[#allocation5 + $0x18] sm:$0xff]
    %v74 = vld [vmem:[%s2] sm:$0x1]
    %v76 = vlaneseq
    %v77 = vshrl.u32 %v76, 7
    %v78 = vsub.s32 0, %v77
    %v79 = vrot.slane %v74, %v78
    %vm81 = vcmask 261120
    %v83 = vsel %vm81, %v68, 0
    %v86 = vsel %vm81, %v69, 0
    %88 = vmatprep.subr.mxu0 0.0
    %89 = vmatpush1.msra.mxu0 %v70
    %90 = vmatprep.subr.mxu0 0.0
    %91 = vmatpush1.msra.mxu0 %v71
    %92 = vmatprep.subr.mxu0 0.0
    %93 = vmatpush1.msra.mxu0 %v72
    %94 = vmatprep.subr.mxu0 0.0
    %95 = vmatpush1.msra.mxu0 %v73
    %96 = vmatprep.subr.mxu0 0.0
    %97 = vmatpush1.msra.mxu0 0.0
    %98 = vmatprep.subr.mxu0 0.0
    %99 = vmatpush1.msra.mxu0 0.0
    %100 = vmatprep.subr.mxu0 0.0
    %101 = vmatpush1.msra.mxu0 0.0
    %102 = vmatprep.subr.mxu0 0.0
    %103 = vmatpush1.msra.mxu0 0.0
    %104 = vmatprep.subr.mxu0 0.0
    %105 = vmatpush1.msra.mxu0 0.0
    %106 = vmatprep.subr.mxu0 0.0
    %107 = vmatpush1.msra.mxu0 0.0
    %108 = vmatprep.subr.mxu0 0.0
    %109 = vmatpush1.msra.mxu0 0.0
    %110 = vmatprep.subr.mxu0 0.0
    %111 = vmatpush1.msra.mxu0 0.0
    %112 = vmatprep.subr.mxu0 0.0
    %113 = vmatpush1.msra.mxu0 0.0
    %114 = vmatprep.subr.mxu0 0.0
    %115 = vmatpush1.msra.mxu0 0.0
    %116 = vmatprep.subr.mxu0 0.0
    %117 = vmatpush1.msra.mxu0 0.0
    %118 = vmatprep.subr.mxu0 0.0
    %119 = vmatpush1.msra.mxu0 0.0
    %120 = vmatprep.subr.mxu0 0.0
    %121 = vmatpush1.msra.mxu0 0.0
    %122 = vmatprep.subr.mxu0 0.0
    %123 = vmatpush1.msra.mxu0 0.0
    %124 = vmatprep.subr.mxu0 0.0
    %125 = vmatpush1.msra.mxu0 0.0
    %126 = vmatprep.subr.mxu0 0.0
    %127 = vmatpush1.msra.mxu0 0.0
    %128 = vmatprep.subr.mxu0 0.0
    %129 = vmatpush1.msra.mxu0 0.0
    %130 = vmatprep.subr.mxu0 0.0
    %131 = vmatpush1.msra.mxu0 0.0
    %132 = vmatprep.subr.mxu0 0.0
    %133 = vmatpush1.msra.mxu0 0.0
    %134 = vmatprep.subr.mxu0 0.0
    %135 = vmatpush1.msra.mxu0 0.0
    %136 = vmatprep.subr.mxu0 0.0
    %137 = vmatpush1.msra.mxu0 0.0
    %138 = vmatprep.subr.mxu0 0.0
    %139 = vmatpush1.msra.mxu0 0.0
    %140 = vmatprep.subr.mxu0 0.0
    %141 = vmatpush1.msra.mxu0 0.0
    %142 = vmatprep.subr.mxu0 0.0
    %143 = vmatpush1.msra.mxu0 0.0
    %144 = vmatprep.subr.mxu0 0.0
    %145 = vmatpush1.msra.mxu0 0.0
    %146 = vmatprep.subr.mxu0 0.0
    %147 = vmatpush1.msra.mxu0 0.0
    %148 = vmatprep.subr.mxu0 0.0
    %149 = vmatpush1.msra.mxu0 0.0
    %150 = vmatprep.subr.mxu0 0.0
    %151 = vmatpush1.msra.mxu0 0.0
    %152 = vmatprep.mubr.f32.mxu0 0.0
    %153 = vmatmul.mubr.f32.gmra.mrb[0].mxu0 %v83
    %v154 = vpop.f32.mrb[0].mxu0
    %v155 = vadd.f32 %v79, %v154
    %v156 = vpop.f32.mrb[0].mxu0
    %157 = vmatprep.mubr.f32.mxu0 0.0
    %158 = vmatmul.mubr.f32.gmra.mrb[0].mxu0 %v86
    %v159 = vpop.f32.mrb[0].mxu0
    %v160 = vadd.f32 %v79, %v159
    %v161 = vpop.f32.mrb[0].mxu0
    %162 = vdwg.mxu0
    %vm163 = vcmp.gt.f32.partialorder %v155, 0.0
    %vm164 = vcmp.gt.f32.partialorder %v160, 0.0
    %v165 = vmul.f32 %v155, 1.442695
    %v166 = vpow.pop %v165
    %v167 = vmul.f32 %v160, 1.442695
    %v168 = vpow.pop %v167
    %v169 = vsub.f32 %v166, 1.0
    %v170 = vsub.f32 %v168, 1.0
    %v171 = vsel %vm163, %v155, %v169
    %v172 = vsel %vm164, %v160, %v170
    %v173 = vld [vmem:[#allocation7] sm:$0xff]
    %v174 = vld [vmem:[#allocation7 + $0x8] sm:$0xff]
    %v175 = vld [vmem:[#allocation7 + $0x10] sm:$0xff]
    %v176 = vld [vmem:[#allocation7 + $0x18] sm:$0xff]
    %v177 = vld [vmem:[%s4] sm:$0x1]
    %v179 = vlaneseq
    %v180 = vshrl.u32 %v179, 7
    %v181 = vsub.s32 0, %v180
    %v182 = vrot.slane %v177, %v181
    %v185 = vsel %vm81, %v171, 0
    %v188 = vsel %vm81, %v172, 0
    %190 = vmatprep.subr.mxu0 0.0
    %191 = vmatpush1.msra.mxu0 %v173
    %192 = vmatprep.subr.mxu0 0.0
    %193 = vmatpush1.msra.mxu0 %v174
    %194 = vmatprep.subr.mxu0 0.0
    %195 = vmatpush1.msra.mxu0 %v175
    %196 = vmatprep.subr.mxu0 0.0
    %197 = vmatpush1.msra.mxu0 %v176
    %198 = vmatprep.subr.mxu0 0.0
    %199 = vmatpush1.msra.mxu0 0.0
    %200 = vmatprep.subr.mxu0 0.0
    %201 = vmatpush1.msra.mxu0 0.0
    %202 = vmatprep.subr.mxu0 0.0
    %203 = vmatpush1.msra.mxu0 0.0
    %204 = vmatprep.subr.mxu0 0.0
    %205 = vmatpush1.msra.mxu0 0.0
    %206 = vmatprep.subr.mxu0 0.0
    %207 = vmatpush1.msra.mxu0 0.0
    %208 = vmatprep.subr.mxu0 0.0
    %209 = vmatpush1.msra.mxu0 0.0
    %210 = vmatprep.subr.mxu0 0.0
    %211 = vmatpush1.msra.mxu0 0.0
    %212 = vmatprep.subr.mxu0 0.0
    %213 = vmatpush1.msra.mxu0 0.0
    %214 = vmatprep.subr.mxu0 0.0
    %215 = vmatpush1.msra.mxu0 0.0
    %216 = vmatprep.subr.mxu0 0.0
    %217 = vmatpush1.msra.mxu0 0.0
    %218 = vmatprep.subr.mxu0 0.0
    %219 = vmatpush1.msra.mxu0 0.0
    %220 = vmatprep.subr.mxu0 0.0
    %221 = vmatpush1.msra.mxu0 0.0
    %222 = vmatprep.subr.mxu0 0.0
    %223 = vmatpush1.msra.mxu0 0.0
    %224 = vmatprep.subr.mxu0 0.0
    %225 = vmatpush1.msra.mxu0 0.0
    %226 = vmatprep.subr.mxu0 0.0
    %227 = vmatpush1.msra.mxu0 0.0
    %228 = vmatprep.subr.mxu0 0.0
    %229 = vmatpush1.msra.mxu0 0.0
    %230 = vmatprep.subr.mxu0 0.0
    %231 = vmatpush1.msra.mxu0 0.0
    %232 = vmatprep.subr.mxu0 0.0
    %233 = vmatpush1.msra.mxu0 0.0
    %234 = vmatprep.subr.mxu0 0.0
    %235 = vmatpush1.msra.mxu0 0.0
    %236 = vmatprep.subr.mxu0 0.0
    %237 = vmatpush1.msra.mxu0 0.0
    %238 = vmatprep.subr.mxu0 0.0
    %239 = vmatpush1.msra.mxu0 0.0
    %240 = vmatprep.subr.mxu0 0.0
    %241 = vmatpush1.msra.mxu0 0.0
    %242 = vmatprep.subr.mxu0 0.0
    %243 = vmatpush1.msra.mxu0 0.0
    %244 = vmatprep.subr.mxu0 0.0
    %245 = vmatpush1.msra.mxu0 0.0
    %246 = vmatprep.subr.mxu0 0.0
    %247 = vmatpush1.msra.mxu0 0.0
    %248 = vmatprep.subr.mxu0 0.0
    %249 = vmatpush1.msra.mxu0 0.0
    %250 = vmatprep.subr.mxu0 0.0
    %251 = vmatpush1.msra.mxu0 0.0
    %252 = vmatprep.subr.mxu0 0.0
    %253 = vmatpush1.msra.mxu0 0.0
    %254 = vmatprep.mubr.f32.mxu0 0.0
    %255 = vmatmul.mubr.f32.gmra.mrb[0].mxu0 %v185
    %v256 = vpop.f32.mrb[0].mxu0
    %v257 = vadd.f32 %v182, %v256
    %v258 = vpop.f32.mrb[0].mxu0
    %259 = vmatprep.mubr.f32.mxu0 0.0
    %260 = vmatmul.mubr.f32.gmra.mrb[0].mxu0 %v188
    %v261 = vpop.f32.mrb[0].mxu0
    %v262 = vadd.f32 %v182, %v261
    %v263 = vpop.f32.mrb[0].mxu0
    %264 = vdwg.mxu0
    %v265 = vmul.f32 %v257, %v257
    %v266 = vmul.f32 %v262, %v262
    %v267 = vsel %vm81, %v265, 0.0
    %268 = vadd.xlane.f32.xlu0 %v267
    %v269 = vpop.xlane.xlu0 %268
    %v270 = vsel %vm81, %v266, 0.0
    %271 = vadd.xlane.f32.xlu0 %v270
    %v272 = vpop.xlane.xlu0 %271
    %v273 = vrsqrt.pop %v269
    %v274 = vrsqrt.pop %v272
    %v275 = vmul.f32 %v257, %v273
    %v276 = vmul.f32 %v262, %v274
    %v277 = vmul.f32 %v275, 2.0
    %v279 = vsel %vm81, %v277, 0
    %v282 = vsel %vm81, %v276, 0
    %284 = vmatprep.subr.mxu0 0.0
    %285 = vmatpush1.xpose.msra.mxu0 %v282
    %286 = vmatprep.subr.mxu0 0.0
    %287 = vmatpush1.xpose.msra.mxu0 0.0
    %288 = vmatprep.subr.mxu0 0.0
    %289 = vmatpush1.xpose.msra.mxu0 0.0
    %290 = vmatprep.subr.mxu0 0.0
    %291 = vmatpush1.xpose.msra.mxu0 0.0
    %292 = vmatprep.subr.mxu0 0.0
    %293 = vmatpush1.xpose.msra.mxu0 0.0
    %294 = vmatprep.subr.mxu0 0.0
    %295 = vmatpush1.xpose.msra.mxu0 0.0
    %296 = vmatprep.subr.mxu0 0.0
    %297 = vmatpush1.xpose.msra.mxu0 0.0
    %298 = vmatprep.subr.mxu0 0.0
    %299 = vmatpush1.xpose.msra.mxu0 0.0
    %300 = vmatprep.subr.mxu0 0.0
    %301 = vmatpush1.xpose.msra.mxu0 0.0
    %302 = vmatprep.subr.mxu0 0.0
    %303 = vmatpush1.xpose.msra.mxu0 0.0
    %304 = vmatprep.subr.mxu0 0.0
    %305 = vmatpush1.xpose.msra.mxu0 0.0
    %306 = vmatprep.subr.mxu0 0.0
    %307 = vmatpush1.xpose.msra.mxu0 0.0
    %308 = vmatprep.subr.mxu0 0.0
    %309 = vmatpush1.xpose.msra.mxu0 0.0
    %310 = vmatprep.subr.mxu0 0.0
    %311 = vmatpush1.xpose.msra.mxu0 0.0
    %312 = vmatprep.subr.mxu0 0.0
    %313 = vmatpush1.xpose.msra.mxu0 0.0
    %314 = vmatprep.subr.mxu0 0.0
    %315 = vmatpush1.xpose.msra.mxu0 0.0
    %316 = vmatprep.subr.mxu0 0.0
    %317 = vmatpush1.xpose.msra.mxu0 0.0
    %318 = vmatprep.subr.mxu0 0.0
    %319 = vmatpush1.xpose.msra.mxu0 0.0
    %320 = vmatprep.subr.mxu0 0.0
    %321 = vmatpush1.xpose.msra.mxu0 0.0
    %322 = vmatprep.subr.mxu0 0.0
    %323 = vmatpush1.xpose.msra.mxu0 0.0
    %324 = vmatprep.subr.mxu0 0.0
    %325 = vmatpush1.xpose.msra.mxu0 0.0
    %326 = vmatprep.subr.mxu0 0.0
    %327 = vmatpush1.xpose.msra.mxu0 0.0
    %328 = vmatprep.subr.mxu0 0.0
    %329 = vmatpush1.xpose.msra.mxu0 0.0
    %330 = vmatprep.subr.mxu0 0.0
    %331 = vmatpush1.xpose.msra.mxu0 0.0
    %332 = vmatprep.subr.mxu0 0.0
    %333 = vmatpush1.xpose.msra.mxu0 0.0
    %334 = vmatprep.subr.mxu0 0.0
    %335 = vmatpush1.xpose.msra.mxu0 0.0
    %336 = vmatprep.subr.mxu0 0.0
    %337 = vmatpush1.xpose.msra.mxu0 0.0
    %338 = vmatprep.subr.mxu0 0.0
    %339 = vmatpush1.xpose.msra.mxu0 0.0
    %340 = vmatprep.subr.mxu0 0.0
    %341 = vmatpush1.xpose.msra.mxu0 0.0
    %342 = vmatprep.subr.mxu0 0.0
    %343 = vmatpush1.xpose.msra.mxu0 0.0
    %344 = vmatprep.subr.mxu0 0.0
    %345 = vmatpush1.xpose.msra.mxu0 0.0
    %346 = vmatprep.subr.mxu0 0.0
    %347 = vmatpush1.xpose.msra.mxu0 0.0
    %348 = vmatprep.mubr.f32.mxu0 0.0
    %349 = vmatmul.mubr.f32.gmra.mrb[0].mxu0 %v279
    %v350 = vpop.f32.mrb[0].mxu0
    %v351 = vadd.f32 0.0, %v350
    %v352 = vpop.f32.mrb[0].mxu0
    %353 = vdwg.mxu0
    %v354 = vmul.f32 %v351, 1.442695
    %v355 = vpow.pop %v354
    %v356 = vld [vmem:[%s5] sm:$0xff]
    %v357 = vld [vmem:[%s6] sm:$0xff]
    %vm358 = vcmask 64512
    %v359 = vsel %vm358, %v355, 0.0
    %360 = vadd.xlane.f32.xlu0 %v359
    %v361 = vpop.xlane.xlu0 %360
    %v362 = vmul.f32 %v355, %v356
    %v363 = vsel %vm358, %v362, 0.0
    %364 = vadd.xlane.f32.xlu0 %v363
    %v365 = vpop.xlane.xlu0 %364
    %v366 = vlog2.pop %v365
    %v367 = vmul.f32 %v366, 0.6931472
    %v368 = vadd.f32 %v361, 1e-08
    %v369 = vlog2.pop %v368
    %v370 = vmul.f32 %v369, 0.6931472
    %v371 = vsub.f32 %v367, %v370
    %vm372 = vcmask 7168
    %v373 = vsel %vm372, %v371, 0.0
    %374 = vadd.xlane.f32.xlu0 %v373
    %v375 = vpop.xlane.xlu0 %374
    %v376 = vrot.slane %v375, 4
    %v377 = vadd.f32 %v375, %v376
    %v378 = vrot.slane %v377, 2
    %v379 = vadd.f32 %v377, %v378
    %v380 = vrot.slane %v379, 1
    %v381 = vadd.f32 %v379, %v380
    %s382 = vtos %v381
    %v383 = vrcp.pop 8.0
    %s384 = vtos %v383
    %s385 = smul.f32 %s382, %s384
    %s386 = ssub.f32 0.0, %s385
    %v387 = vrot.slane %v359, 4
    %v388 = vadd.f32 %v359, %v387
    %v389 = vrot.slane %v388, 2
    %v390 = vadd.f32 %v388, %v389
    %v391 = vrot.slane %v390, 1
    %v392 = vadd.f32 %v390, %v391
    %v393 = vmul.f32 %v355, %v357
    %v394 = vsel %vm358, %v393, 0.0
    %v395 = vrot.slane %v394, 4
    %v396 = vadd.f32 %v394, %v395
    %v397 = vrot.slane %v396, 2
    %v398 = vadd.f32 %v396, %v397
    %v399 = vrot.slane %v398, 1
    %v400 = vadd.f32 %v398, %v399
    %v401 = vlog2.pop %v400
    %v402 = vmul.f32 %v401, 0.6931472
    %v403 = vadd.f32 %v392, 1e-08
    %v404 = vlog2.pop %v403
    %v405 = vmul.f32 %v404, 0.6931472
    %v406 = vsub.f32 %v402, %v405
    %vm407 = vcmask 57344
    %v408 = vsel %vm407, %v406, 0.0
    %409 = vadd.xlane.f32.xlu0 %v408
    %v410 = vpop.xlane.xlu0 %409
    %v411 = vrot.slane %v410, 4
    %v412 = vadd.f32 %v410, %v411
    %v413 = vrot.slane %v412, 2
    %v414 = vadd.f32 %v412, %v413
    %v415 = vrot.slane %v414, 1
    %v416 = vadd.f32 %v414, %v415
    %s417 = vtos %v416
    %v418 = vrcp.pop 8.0
    %s419 = vtos %v418
    %s420 = smul.f32 %s417, %s419
    %s421 = ssub.f32 0.0, %s420
    %s422 = smul.f32 %s386, 0.6
    %s423 = smul.f32 %s421, 0.4
    %s424 = sadd.f32 %s422, %s423
    %s425 = scalar_lea.smem [#allocation8], 0
    %426 = sst [smem:[%s425]] %s424
    // Predicated region
    $region42: #{tpu_custom_call.1} parent=1 // pred_check
      _
    $region43: #{tpu_custom_call.1} parent=1 // pred_check_branch
      %428 = sbr.rel (0) target = $region45
    $region44: #{tpu_custom_call.1} parent=1 // pred_region
      %s430 = ssub.s32 16, 16
      %431 = vsyncadd [#allocation4], %s430
      %434 = dma.smem_to_hbm [#allocation8], 16, %s7, [#allocation4]
    $region45: #{tpu_custom_call.1} parent=1 // pred_fallthru
      _
    // Predicated region
    $region46: #{tpu_custom_call.1} parent=1 // pred_check
      _
    $region47: #{tpu_custom_call.1} parent=1 // pred_check_branch
      %436 = sbr.rel (0) target = $region49
    $region48: #{tpu_custom_call.1} parent=1 // pred_region
      %437 = dma.done [#allocation4], 16
    $region49: #{tpu_custom_call.1} parent=1 // pred_fallthru
      _
    %438 = sfence
    %439 = vsyncpa [#allocation3], 1
    %440 = vsyncpa [#allocation6], 1
    %441 = vsyncpa [#allocation4], 1

</llo_original>
